<compile_context>
chip_gen: v5e
topology: v5e:2x2
jax: 0.10.0
libtpu: 0.0.40
codegen_flags: <defaults>
</compile_context>

<pallas_src>
import jax
import jax.numpy as jnp
from jax import lax
from jax.experimental import pallas as pl
from jax.experimental.pallas import tpu as pltpu


def _feedforward_kernel(x_ref, w1_ref, b1_ref, w2_ref, b2_ref, o_ref):
    """One batch tile; batch lives on the lane axis of the intermediate and
    of the output block (lane-dense stores).

    x_ref : (TM, In)  f32  input tile, native (batch, feature) layout
    w1_ref: (H, In)   f32  fc1 weight (PyTorch layout), VMEM-resident
    b1_ref: (H, 1)    f32  fc1 bias
    w2_ref: (H, 1)    f32  fc2 weight column
    b2_ref: (1, 1)    f32  fc2 bias (SMEM scalar)
    o_ref : (1, TM)   f32  sigmoid output, lane-dense along batch
    """
    # fc1 on the MXU: contract the In axes of (H, In) and (TM, In) -> (H, TM).
    # The layout flip of the x tile happens inside the contraction, not as a
    # wrapper HBM pre-pass.
    h = lax.dot_general(
        w1_ref[...], x_ref[...],
        dimension_numbers=(((1,), (1,)), ((), ())),
        preferred_element_type=jnp.float32)
    # bias + ReLU on the VPU.
    h = jnp.maximum(h + b1_ref[...], 0.0)
    # fc2 (single output unit): VPU multiply + sublane (XLU) reduction instead
    # of an (TM, H) @ (H, 1) MXU matmul.
    z = jnp.sum(h * w2_ref[...], axis=0, keepdims=True) + b2_ref[0, 0]
    # Exact sigmoid: exp on the EUP; the divide over (1, TM) elems is negligible.
    o_ref[...] = (1.0 / (1.0 + jnp.exp(-z))).astype(o_ref.dtype)


def _round_up(n, m):
    return ((n + m - 1) // m) * m


def _choose_batch_tile(batch, *, max_tile=2048, min_grid_steps=1):
    """Pick the batch tile size.

    * Single full-extent block when the whole batch fits one tile and only one
      grid step is requested: no (8,128) constraint and no per-step pipeline
      overhead (best on single-TC v5e/v6e).
    * Otherwise a multiple of 128 (lane-dense output blocks) chosen so the
      grid has at least `min_grid_steps` steps (>= 2 lets v7x's two
      TensorCores both get work via the "parallel" batch axis).

    Per-step VMEM footprint is only ~(2*In*4 + H*4 + 8)*TM bytes
    (~500 KiB at TM=2048), far below every generation's VMEM limit.
    """
    if min_grid_steps <= 1 and batch <= max_tile:
        return batch
    steps = max(int(min_grid_steps), 1)
    cap = max(128, (max_tile // 128) * 128)
    tm = _round_up(pl.cdiv(batch, steps), 128)
    return max(128, min(tm, cap))


def feedforward(x, w1, b1, w2, b2, *, max_tile=2048, min_grid_steps=1):
    """Forward pass of the PyTorch `Feedforward` module.

    x : (B, input_size)            f32
    w1: (hidden_size, input_size)  f32   (fc1.weight, PyTorch layout)
    b1: (hidden_size,)             f32   (fc1.bias)
    w2: (1, hidden_size)           f32   (fc2.weight)
    b2: (1,)                       f32   (fc2.bias)
    returns: (B, 1) f32 = sigmoid(fc2(relu(fc1(x))))
    """
    batch, input_size = x.shape
    hidden_size = w1.shape[0]

    xf = x.astype(jnp.float32)                              # no-op if already f32
    w1f = w1.astype(jnp.float32)
    b1c = b1.reshape(hidden_size, 1).astype(jnp.float32)
    w2c = w2.reshape(hidden_size, 1).astype(jnp.float32)
    b2c = b2.reshape(1, 1).astype(jnp.float32)

    tm = _choose_batch_tile(batch, max_tile=max_tile, min_grid_steps=min_grid_steps)
    padded = _round_up(batch, tm)
    if padded != batch:
        xf = jnp.pad(xf, ((0, padded - batch), (0, 0)))
    grid = (padded // tm,)

    out = pl.pallas_call(
        _feedforward_kernel,
        out_shape=jax.ShapeDtypeStruct((1, padded), jnp.float32),
        grid=grid,
        in_specs=[
            # x tile pipelines over the batch axis in its native HBM layout.
            pl.BlockSpec((tm, input_size), lambda i: (i, 0)),
            # Weights/biases: constant block index -> stay resident in VMEM.
            pl.BlockSpec((hidden_size, input_size), lambda i: (0, 0)),
            pl.BlockSpec((hidden_size, 1), lambda i: (0, 0)),
            pl.BlockSpec((hidden_size, 1), lambda i: (0, 0)),
            # Scalar fc2 bias: SMEM, no padded VMEM tile / extra DMA.
            pl.BlockSpec(memory_space=pltpu.MemorySpace.SMEM),
        ],
        out_specs=pl.BlockSpec((1, tm), lambda i: (0, i)),
        compiler_params=pltpu.CompilerParams(
            # Batch tiles are independent: shard across TensorCores on v7x.
            dimension_semantics=(pltpu.PARALLEL,),
        ),
    )(xf, w1f, b1c, w2c, b2c)

    # (1, B) lane-dense kernel output -> (B, 1) module output.
    return out[0, :batch].reshape(batch, 1)


def init_params(key, input_size, hidden_size):
    """Deterministic init mimicking torch.nn.Linear (uniform +/- 1/sqrt(fan_in)),
    stored in PyTorch layouts."""
    k1, k2, k3, k4 = jax.random.split(key, 4)
    bound1 = 1.0 / jnp.sqrt(float(input_size))
    bound2 = 1.0 / jnp.sqrt(float(hidden_size))
    w1 = jax.random.uniform(k1, (hidden_size, input_size), jnp.float32, -bound1, bound1)
    b1 = jax.random.uniform(k2, (hidden_size,), jnp.float32, -bound1, bound1)
    w2 = jax.random.uniform(k3, (1, hidden_size), jnp.float32, -bound2, bound2)
    b2 = jax.random.uniform(k4, (1,), jnp.float32, -bound2, bound2)
    return w1, b1, w2, b2


def _reference(x, w1, b1, w2, b2):
    h = jnp.maximum(x @ w1.T + b1, 0.0)
    return jax.nn.sigmoid(h @ w2.T + b2)


if __name__ == "__main__":
    key = jax.random.PRNGKey(0)
    kx, kp, kt = jax.random.split(key, 3)

    input_size = 16
    hidden_size = 32

    w1, b1, w2, b2 = init_params(kp, input_size, hidden_size)

    # Small batch: single full-extent block, no grid / pipeline overhead.
    x_small = jax.random.normal(kx, (8, input_size), jnp.float32)
    out_small = jax.block_until_ready(feedforward(x_small, w1, b1, w2, b2))
    ref_small = _reference(x_small, w1, b1, w2, b2)
    assert out_small.shape == (8, 1)
    assert jnp.allclose(out_small, ref_small, atol=2e-3, rtol=0.0), "small-batch mismatch"

    # Tiled path: cap the tile so the batch pipelines over >=2 grid steps
    # (these steps would shard across v7x's two TensorCores).
    x_tiled = jax.random.normal(kt, (512, input_size), jnp.float32)
    out_tiled = jax.block_until_ready(
        feedforward(x_tiled, w1, b1, w2, b2, max_tile=256, min_grid_steps=2))
    ref_tiled = _reference(x_tiled, w1, b1, w2, b2)
    assert out_tiled.shape == (512, 1)
    assert jnp.allclose(out_tiled, ref_tiled, atol=2e-3, rtol=0.0), "tiled-batch mismatch"

    print("KERNEL_OK")
</pallas_src>

<mosaic_0001>
module attributes {stable_mosaic.version = 11 : i64} {
  func.func @_feedforward_kernel(%arg0: i32, %arg1: memref<8x16xf32, #tpu.memory_space<vmem>>, %arg2: memref<32x16xf32, #tpu.memory_space<vmem>>, %arg3: memref<32x1xf32, #tpu.memory_space<vmem>>, %arg4: memref<32x1xf32, #tpu.memory_space<vmem>>, %arg5: memref<1x1xf32, #tpu.memory_space<smem>>, %arg6: memref<1x8xf32, #tpu.memory_space<vmem>>) attributes {dimension_semantics = [#tpu.dimension_semantics<parallel>], iteration_bounds = array<i64: 1>, scalar_prefetch = 0 : i64, scratch_operands = 0 : i64, tpu.core_type = #tpu.core_type<tc>, window_params = [{transform_indices = @transform_0, window_bounds = array<i64: 8, 16>}, {pipeline_mode = #tpu.pipeline_mode<synchronous>, transform_indices = @transform_1, window_bounds = array<i64: 32, 16>}, {pipeline_mode = #tpu.pipeline_mode<synchronous>, transform_indices = @transform_2, window_bounds = array<i64: 32, 1>}, {pipeline_mode = #tpu.pipeline_mode<synchronous>, transform_indices = @transform_3, window_bounds = array<i64: 32, 1>}, {transform_indices = @transform_4, window_bounds = array<i64: 1, 1>}, {transform_indices = @transform_5, window_bounds = array<i64: 1, 8>}]} {
    %c0 = arith.constant 0 : index
    %c0_0 = arith.constant 0 : index
    %0 = vector.load %arg2[%c0, %c0_0] : memref<32x16xf32, #tpu.memory_space<vmem>>, vector<32x16xf32>
    %c0_1 = arith.constant 0 : index
    %c0_2 = arith.constant 0 : index
    %1 = vector.load %arg1[%c0_1, %c0_2] : memref<8x16xf32, #tpu.memory_space<vmem>>, vector<8x16xf32>
    %cst = arith.constant dense<0.000000e+00> : vector<32x8xf32>
    %2 = tpu.matmul %0, %1, %cst {dimension_numbers = #tpu.dot_dimension_numbers<[1], [1], [0], [0], [0, 0, 1, 0], [], []>} : vector<32x16xf32>, vector<8x16xf32>, vector<32x8xf32> -> vector<32x8xf32>
    %c0_3 = arith.constant 0 : index
    %c0_4 = arith.constant 0 : index
    %3 = vector.load %arg3[%c0_3, %c0_4] : memref<32x1xf32, #tpu.memory_space<vmem>>, vector<32x1xf32>
    %4 = vector.broadcast %3 : vector<32x1xf32> to vector<32x8xf32>
    %5 = arith.addf %2, %4 : vector<32x8xf32>
    %cst_5 = arith.constant 0.000000e+00 : f32
    %6 = vector.broadcast %cst_5 : f32 to vector<32x8xf32>
    %7 = arith.maximumf %5, %6 : vector<32x8xf32>
    %c0_6 = arith.constant 0 : index
    %c0_7 = arith.constant 0 : index
    %8 = vector.load %arg4[%c0_6, %c0_7] : memref<32x1xf32, #tpu.memory_space<vmem>>, vector<32x1xf32>
    %9 = vector.broadcast %8 : vector<32x1xf32> to vector<32x8xf32>
    %10 = arith.mulf %7, %9 : vector<32x8xf32>
    %cst_8 = arith.constant dense<0.000000e+00> : vector<8xf32>
    %11 = vector.multi_reduction <add>, %10, %cst_8 [0] : vector<32x8xf32> to vector<8xf32>
    %12 = vector.shape_cast %11 : vector<8xf32> to vector<1x8xf32>
    %c0_9 = arith.constant 0 : index
    %c0_10 = arith.constant 0 : index
    %13 = memref.load %arg5[%c0_9, %c0_10] : memref<1x1xf32, #tpu.memory_space<smem>>
    %14 = vector.broadcast %13 : f32 to vector<1x8xf32>
    %15 = arith.addf %12, %14 : vector<1x8xf32>
    %cst_11 = arith.constant 0.000000e+00 : f32
    %16 = vector.broadcast %cst_11 : f32 to vector<1x8xf32>
    %17 = arith.subf %16, %15 : vector<1x8xf32>
    %18 = math.exp %17 : vector<1x8xf32>
    %cst_12 = arith.constant 1.000000e+00 : f32
    %19 = vector.broadcast %cst_12 : f32 to vector<1x8xf32>
    %20 = arith.addf %19, %18 : vector<1x8xf32>
    %cst_13 = arith.constant 1.000000e+00 : f32
    %21 = vector.broadcast %cst_13 : f32 to vector<1x8xf32>
    %22 = arith.divf %21, %20 : vector<1x8xf32>
    %c0_14 = arith.constant 0 : index
    %c0_15 = arith.constant 0 : index
    %23 = vector.load %arg6[%c0_14, %c0_15] : memref<1x8xf32, #tpu.memory_space<vmem>>, vector<1x8xf32>
    tpu.vector_store %arg6[%c0_14, %c0_15], %22 {strides = array<i32>} : memref<1x8xf32, #tpu.memory_space<vmem>>, vector<1x8xf32>,
    return
  }
  func.func @transform_0(%arg0: i32) -> (i32, i32) {
    %c0_i32 = arith.constant 0 : i32
    %c0_i32_0 = arith.constant 0 : i32
    return %arg0, %c0_i32 : i32, i32
  }
  func.func @transform_1(%arg0: i32) -> (i32, i32) {
    %c0_i32 = arith.constant 0 : i32
    %c0_i32_0 = arith.constant 0 : i32
    %c0_i32_1 = arith.constant 0 : i32
    return %c0_i32, %c0_i32_0 : i32, i32
  }
  func.func @transform_2(%arg0: i32) -> (i32, i32) {
    %c0_i32 = arith.constant 0 : i32
    %c0_i32_0 = arith.constant 0 : i32
    %c0_i32_1 = arith.constant 0 : i32
    return %c0_i32, %c0_i32_0 : i32, i32
  }
  func.func @transform_3(%arg0: i32) -> (i32, i32) {
    %c0_i32 = arith.constant 0 : i32
    %c0_i32_0 = arith.constant 0 : i32
    %c0_i32_1 = arith.constant 0 : i32
    return %c0_i32, %c0_i32_0 : i32, i32
  }
  func.func @transform_4(%arg0: i32) -> (i32, i32) {
    %c0_i32 = arith.constant 0 : i32
    %c0_i32_0 = arith.constant 0 : i32
    %c0_i32_1 = arith.constant 0 : i32
    return %c0_i32, %c0_i32_0 : i32, i32
  }
  func.func @transform_5(%arg0: i32) -> (i32, i32) {
    %c0_i32 = arith.constant 0 : i32
    %c0_i32_0 = arith.constant 0 : i32
    return %c0_i32, %arg0 : i32, i32
  }
}

</mosaic_0001>

<llo_original>
// kernel: tpu_custom_call.1
$region0: #{tpu_custom_call.1}
  #allocation0 [shape = 'u32[]', space=smem, size = 0x4, offset = 0x4, fixed_abs, tag = 'smem constant byte address 0x4 - core index']
  #allocation1 [shape = 'u32[72,128]{1,0:T(1,128)}', space=vmem, size = 0x9000, scoped, tag = 'internal scratch']
  #allocation2 [shape = 'f32[1,1]{1,0:T(1,128)S(6)}', space=smem, size = 0x200, scoped, tag = 'scoped memory for tpu_custom_call.1']
  %s0 = inlined_call_operand.vmem [shape: f32[8,16], index: 0, kind: input, shape index: {}]
  %s1 = inlined_call_operand.vmem [shape: f32[32,16], index: 1, kind: input, shape index: {}]
  %s2 = inlined_call_operand.vmem [shape: f32[32,1], index: 2, kind: input, shape index: {}]
  %s3 = inlined_call_operand.vmem [shape: f32[32,1], index: 3, kind: input, shape index: {}]
  %s4 = inlined_call_operand.<no memory space> [shape: f32[1,1], index: 4, kind: input, shape index: {}]
  %s5 = inlined_call_operand.hbm [shape: f32[1,8], index: 5, kind: output, shape index: {}]
  %s6 = sld [smem:[#allocation0]]
  $region30: #{tpu_custom_call.1} parent=0
    _
  %s8 = ssub.s32 1, %s6
  %s9 = scalar_select 0, %s8, %s6
  %10 = sst [smem:[#allocation2]] %s4
  $region1: #{tpu_custom_call.1} parent=0
    #allocation3 [shape = 'u8[512]{0}', space=vmem, size = 0x400, scoped, tag = 'output window, operand 0, single buffered']
    #allocation4 [shape = 's32[1]{0}', space=sflag, size = 0x4, scoped, tag = 'scoped memory for tpu_custom_call.1']
    %11 = vsyncpa [#allocation4], 0
    // Predicated region
    $region2: #{tpu_custom_call.1} parent=1 // pred_check
      _
    $region3: #{tpu_custom_call.1} parent=1 // pred_check_branch
      %13 = sbr.rel (0) target = $region5
    $region4: #{tpu_custom_call.1} parent=1 // pred_region
      _
    $region5: #{tpu_custom_call.1} parent=1 // pred_fallthru
      _
    // Predicated region
    $region6: #{tpu_custom_call.1} parent=1 // pred_check
      _
    $region7: #{tpu_custom_call.1} parent=1 // pred_check_branch
      %15 = sbr.rel (0) target = $region9
    $region8: #{tpu_custom_call.1} parent=1 // pred_region
      _
    $region9: #{tpu_custom_call.1} parent=1 // pred_fallthru
      _
    // Predicated region
    $region10: #{tpu_custom_call.1} parent=1 // pred_check
      _
    $region11: #{tpu_custom_call.1} parent=1 // pred_check_branch
      %17 = sbr.rel (0) target = $region13
    $region12: #{tpu_custom_call.1} parent=1 // pred_region
      _
    $region13: #{tpu_custom_call.1} parent=1 // pred_fallthru
      _
    // Predicated region
    $region14: #{tpu_custom_call.1} parent=1 // pred_check
      _
    $region15: #{tpu_custom_call.1} parent=1 // pred_check_branch
      %19 = sbr.rel (0) target = $region17
    $region16: #{tpu_custom_call.1} parent=1 // pred_region
      _
    $region17: #{tpu_custom_call.1} parent=1 // pred_fallthru
      _
    // Predicated region
    $region18: #{tpu_custom_call.1} parent=1 // pred_check
      _
    $region19: #{tpu_custom_call.1} parent=1 // pred_check_branch
      %21 = sbr.rel (0) target = $region21
    $region20: #{tpu_custom_call.1} parent=1 // pred_region
      _
    $region21: #{tpu_custom_call.1} parent=1 // pred_fallthru
      _
    %v22 = vld [vmem:[%s1] sm:$0xff]
    %v23 = vld [vmem:[%s1 + $0x8] sm:$0xff]
    %v24 = vld [vmem:[%s1 + $0x10] sm:$0xff]
    %v25 = vld [vmem:[%s1 + $0x18] sm:$0xff]
    %v26 = vld [vmem:[%s0] sm:$0xff]
    %v27 = vld [vmem:[%s2] sm:$0xff]
    %v28 = vld [vmem:[%s2 + $0x8] sm:$0xff]
    %v29 = vld [vmem:[%s2 + $0x10] sm:$0xff]
    %v30 = vld [vmem:[%s2 + $0x18] sm:$0xff]
    %32 = vset.pattern.permute.xlu0 0
    %33 = vperm.xlu0 %32, %v27
    %v34 = vpop.permute.xlu0 %33
    %37 = vset.pattern.permute.xlu0 0
    %38 = vperm.xlu0 %37, %v28
    %v39 = vpop.permute.xlu0 %38
    %42 = vset.pattern.permute.xlu0 0
    %43 = vperm.xlu0 %42, %v29
    %v44 = vpop.permute.xlu0 %43
    %47 = vset.pattern.permute.xlu0 0
    %48 = vperm.xlu0 %47, %v30
    %v49 = vpop.permute.xlu0 %48
    %vm51 = vcmask 130048
    %v53 = vsel %vm51, %v22, 0
    %v56 = vsel %vm51, %v23, 0
    %v59 = vsel %vm51, %v24, 0
    %v62 = vsel %vm51, %v25, 0
    %v65 = vsel %vm51, %v26, 0
    %67 = vmatpush.xpose.msra.mxu0 0.0
    %68 = vmatpush.xpose.msra.mxu0 0.0
    %69 = vmatpush.xpose.msra.mxu0 0.0
    %70 = vmatpush.xpose.msra.mxu0 0.0
    %71 = vmatpush.xpose.msra.mxu0 0.0
    %72 = vmatpush.xpose.msra.mxu0 0.0
    %73 = vmatpush.xpose.msra.mxu0 0.0
    %74 = vmatpush.xpose.msra.mxu0 0.0
    %75 = vmatpush.xpose.msra.mxu0 0.0
    %76 = vmatpush.xpose.msra.mxu0 0.0
    %77 = vmatpush.xpose.msra.mxu0 0.0
    %78 = vmatpush.xpose.msra.mxu0 0.0
    %79 = vmatpush.xpose.msra.mxu0 0.0
    %80 = vmatpush.xpose.msra.mxu0 0.0
    %81 = vmatpush.xpose.msra.mxu0 0.0
    %82 = vmatpush.xpose.msra.mxu0 %v65
    %83 = vmatmul.f32.gmra.mxu0 %v53
    %v84 = vpop.f32.mrf.mxu0
    %v85 = vadd.f32 %v34, %v84
    %86 = vmatmul.f32.gmra.mxu0 %v56
    %v87 = vpop.f32.mrf.mxu0
    %v88 = vadd.f32 %v39, %v87
    %89 = vmatmul.f32.gmra.mxu0 %v59
    %v90 = vpop.f32.mrf.mxu0
    %v91 = vadd.f32 %v44, %v90
    %92 = vmatmul.f32.gmra.mxu0 %v62
    %v93 = vpop.f32.mrf.mxu0
    %v94 = vadd.f32 %v49, %v93
    %95 = vdwg.mxu0
    %v96 = vmax.f32 %v85, 0.0
    %v97 = vmax.f32 %v88, 0.0
    %v98 = vmax.f32 %v91, 0.0
    %v99 = vmax.f32 %v94, 0.0
    %v100 = vld [vmem:[%s3] sm:$0xff]
    %v101 = vld [vmem:[%s3 + $0x8] sm:$0xff]
    %v102 = vld [vmem:[%s3 + $0x10] sm:$0xff]
    %v103 = vld [vmem:[%s3 + $0x18] sm:$0xff]
    %105 = vset.pattern.permute.xlu0 0
    %106 = vperm.xlu0 %105, %v100
    %v107 = vpop.permute.xlu0 %106
    %110 = vset.pattern.permute.xlu0 0
    %111 = vperm.xlu0 %110, %v101
    %v112 = vpop.permute.xlu0 %111
    %115 = vset.pattern.permute.xlu0 0
    %116 = vperm.xlu0 %115, %v102
    %v117 = vpop.permute.xlu0 %116
    %120 = vset.pattern.permute.xlu0 0
    %121 = vperm.xlu0 %120, %v103
    %v122 = vpop.permute.xlu0 %121
    %v124 = vmul.f32 %v96, %v107
    %v125 = vmul.f32 %v97, %v112
    %v126 = vmul.f32 %v98, %v117
    %v127 = vmul.f32 %v99, %v122
    %vm128 = vcmask 64512
    %v129 = vsel %vm128, %v124, 0.0
    %v130 = vsel %vm128, %v125, 0.0
    %v131 = vadd.f32 %v129, %v130
    %v132 = vsel %vm128, %v126, 0.0
    %v133 = vadd.f32 %v131, %v132
    %v134 = vsel %vm128, %v127, 0.0
    %v135 = vadd.f32 %v133, %v134
    %v136 = vrot.slane %v135, 4
    %v137 = vadd.f32 %v135, %v136
    %v138 = vrot.slane %v137, 2
    %v139 = vadd.f32 %v137, %v138
    %v140 = vrot.slane %v139, 1
    %v141 = vadd.f32 %v139, %v140
    %s142 = sld [smem:[#allocation2]]
    %v143 = vstv %s142
    %v144 = vadd.f32 %v141, %v143
    %v145 = vsub.f32 0.0, %v144
    %v146 = vmul.f32 %v145, 1.442695
    %v147 = vpow.pop %v146
    %v148 = vadd.f32 %v147, 1.0
    %v149 = vrcp.pop %v148
    %v150 = vmul.f32 %v148, %v149
    %v151 = vsub.f32 1.0, %v150
    %v152 = vmul.f32 %v149, %v151
    %v153 = vadd.f32 %v149, %v152
    %vm154 = vweird.f32 %v148
    %vm155 = vweird.f32 %v149
    %vm156 = vmor %vm154, %vm155
    %v157 = vsel %vm156, %v149, %v153
    %v158 = vand.u32 2147483647, %v148
    %vm159 = vcmp.eq.f32.partialorder %v158, 8.507059e+37
    %v160 = vand.u32 %v148, 2147483648
    %v161 = vor.u32 1.1754944e-38, %v160
    %v162 = vsel %vm159, %v161, %v157
    %v163 = vmul.f32 1.0, %v162
    %vm164 = vcmask 57344
    %165 = vst.msk [vmem:[#allocation3] sm:$0x1] %vm164, %v163
    // Predicated region
    $region22: #{tpu_custom_call.1} parent=1 // pred_check
      _
    $region23: #{tpu_custom_call.1} parent=1 // pred_check_branch
      %167 = sbr.rel (0) target = $region25
    $region24: #{tpu_custom_call.1} parent=1 // pred_region
      %169 = vsyncadd [#allocation4], 0
      %s171 = sshll.u32 [#allocation3], 4
      %s172 = int_to_ptr.vmem [resolvable:$true] %s171
      %s173 = sshll.u32 %s5, 4
      %s174 = int_to_ptr.hbm [resolvable:$true] %s173
      %176 = dma.vmem_to_hbm [thread:$0]  %s172, 16, %s174, [#allocation4]
    $region25: #{tpu_custom_call.1} parent=1 // pred_fallthru
      _
    // Predicated region
    $region26: #{tpu_custom_call.1} parent=1 // pred_check
      _
    $region27: #{tpu_custom_call.1} parent=1 // pred_check_branch
      %178 = sbr.rel (0) target = $region29
    $region28: #{tpu_custom_call.1} parent=1 // pred_region
      %180 = dma.done [#allocation4], 16
    $region29: #{tpu_custom_call.1} parent=1 // pred_fallthru
      _
    %181 = vsyncpa [#allocation4], 1

</llo_original>
